<compile_context>
chip_gen: v5e
topology: v5e:2x2
jax: 0.10.0
libtpu: 0.0.40
codegen_flags: <defaults>
</compile_context>

<pallas_src>
import functools

import jax
import jax.numpy as jnp
from jax.experimental import pallas as pl
from jax.experimental.pallas import tpu as pltpu

VALUE = 1e-6
# Target input payload per grid step (bytes).  Double-buffered inputs then use
# ~2x this, staying under v5e's 16 MiB scoped-VMEM default (and far under
# v6e/v7x's 32 MiB), while each step's DMA stays bandwidth- not
# overhead-dominated on all generations.
_STEP_BYTES = 6 * 1024 * 1024
_LANE_CANDIDATES = (1024, 896, 768, 640, 512, 384, 256, 128)


def _choose_tiling(hw, n, c, x_itemsize, a_itemsize):
    """Static tiling decisions (all plain Python ints/bools)."""
    # 1) Lane width: prefer a multiple of 128 that divides hw exactly, so no
    #    padded copy of the inputs is ever materialized.
    lane = 0
    for cand in _LANE_CANDIDATES:
        if hw % cand == 0:
            lane = cand
            break
    needs_pad = lane == 0
    if needs_pad:
        lane = 128                       # minimal pad (< 128 extra px/sample)
        rows = -(-hw // lane)
        a_itemsize = 1                   # answer folded to int8 in the pad pass
    else:
        rows = hw // lane

    bytes_per_row = (c * x_itemsize + 2 * a_itemsize) * lane
    cap = max(8, (_STEP_BYTES // bytes_per_row) // 8 * 8)

    # 2) Row block: full extent when it fits (block == full dim is always
    #    legal), else a multiple-of-8 divisor of rows (no ragged tail), else a
    #    ragged tail that is masked in-kernel.
    if rows <= cap:
        r_blk = rows
    else:
        r_blk = 0
        for d in range(cap, 7, -8):
            if rows % d == 0:
                r_blk = d
                break
        if r_blk == 0:
            r_blk = cap
    row_blocks = -(-rows // r_blk)
    mask_rows = row_blocks * r_blk != rows

    # 3) Batch samples per step when one sample's image fits a single block,
    #    amortizing the fixed per-step cost (n_blk kept a divisor of N).
    if row_blocks == 1:
        n_max = min(n, max(1, _STEP_BYTES // max(bytes_per_row * r_blk, 1)))
        n_blk = 1
        for d in range(n_max, 0, -1):
            if n % d == 0:
                n_blk = d
                break
    else:
        n_blk = 1
    n_grid = n // n_blk

    # 4) Megacore split: if the N axis offers no parallelism, split the
    #    spatial reduction across a second 'parallel' grid axis (v7x 2 TCs).
    #    Only when row_blocks is even, so no block index is ever fully OOB.
    if n_grid == 1 and row_blocks >= 2 and row_blocks % 2 == 0:
        n_split, s_steps = 2, row_blocks // 2
    else:
        n_split, s_steps = 1, row_blocks

    return dict(lane=lane, rows=rows, r_blk=r_blk, n_blk=n_blk, n_grid=n_grid,
                n_split=n_split, s_steps=s_steps, needs_pad=needs_pad,
                mask_rows=mask_rows)


def _mpa_count_kernel(x_ref, a_ref, out_ref, *, rows, s_steps, mask_rows):
    """Per-(sample, split) partial lane counts, accumulated over spatial axis.

    x_ref:   (n_blk, C, r_blk, lane)   logits (native dtype)
    a_ref:   (n_blk, 2, r_blk, lane)   answer (nonzero == True)
    out_ref: (n_blk, 1, 4, lane) f32   resident across the last grid axis,
             rows = [inter0, inter1, total0, total1]
    """
    p = pl.program_id(1)
    s = pl.program_id(2)

    @pl.when(s == 0)
    def _init():
        out_ref[...] = jnp.zeros_like(out_ref)

    n_blk, num_classes, r_blk, lane = x_ref.shape
    f32 = jnp.float32
    # bf16 stays native (v6e/v7x VPUs do bf16; Mosaic widens on v5e); other
    # dtypes are upcast to f32 for the max chain / compare.
    native = jnp.dtype(x_ref.dtype) in (jnp.dtype(jnp.float32),
                                        jnp.dtype(jnp.bfloat16))

    if mask_rows:
        row0 = (p * s_steps + s) * r_blk
        rid = jax.lax.broadcasted_iota(jnp.int32, (r_blk, lane), 0)
        valid = (rid + row0) < rows

    zeros = jnp.zeros((r_blk, lane), dtype=f32)
    parts = []
    for b in range(n_blk):
        # argmax(channel) == 0  <=>  x[0] >= max over all channels
        # (first-index tiebreak, same as torch.argmax).  Pure-VPU unrolled
        # maximum chain over dense (r_blk, lane) tiles.
        x0 = x_ref[b, 0] if native else x_ref[b, 0].astype(f32)
        if num_classes >= 2:
            m = x_ref[b, 1] if native else x_ref[b, 1].astype(f32)
            for ch in range(2, num_classes):
                xc = x_ref[b, ch] if native else x_ref[b, ch].astype(f32)
                m = jnp.maximum(m, xc)
            pred1 = x0 >= m          # NOTE: NaN logits classify as class != 0
        else:
            pred1 = jnp.ones((r_blk, lane), dtype=jnp.bool_)

        a0 = a_ref[b, 0]
        a1 = a_ref[b, 1]
        if a0.dtype != jnp.bool_:
            a0 = a0 != 0
            a1 = a1 != 0
        if mask_rows:
            a0 = jnp.logical_and(a0, valid)
            a1 = jnp.logical_and(a1, valid)
        a0f = a0.astype(f32)
        a1f = a1.astype(f32)

        # Sublane (XLU) reductions to per-lane partials; the tiny lane-reduce
        # happens on (N, n_split, 4, lane) in the wrapper.
        i0 = jnp.sum(jnp.where(pred1, a0f, zeros), axis=0, keepdims=True)
        i1 = jnp.sum(jnp.where(pred1, zeros, a1f), axis=0, keepdims=True)
        t0 = jnp.sum(a0f, axis=0, keepdims=True)
        t1 = jnp.sum(a1f, axis=0, keepdims=True)
        parts.append(jnp.concatenate([i0, i1, t0, t1], axis=0))   # (4, lane)

    # One coalesced accumulator RMW (instead of four masked single-row stores).
    out_ref[...] += jnp.stack(parts, axis=0)[:, None, :, :]


def _mpa_counts(x, a, t):
    n, c, rows, lane = x.shape
    n_blk, n_grid = t["n_blk"], t["n_grid"]
    n_split, s_steps, r_blk = t["n_split"], t["s_steps"], t["r_blk"]

    kernel = functools.partial(_mpa_count_kernel, rows=rows, s_steps=s_steps,
                               mask_rows=t["mask_rows"])
    in_map = lambda i, p, s: (i, 0, p * s_steps + s, 0)
    return pl.pallas_call(
        kernel,
        out_shape=jax.ShapeDtypeStruct((n, n_split, 4, lane), jnp.float32),
        grid_spec=pltpu.PrefetchScalarGridSpec(
            num_scalar_prefetch=0,
            grid=(n_grid, n_split, s_steps),
            in_specs=[
                pl.BlockSpec((n_blk, c, r_blk, lane), in_map),
                pl.BlockSpec((n_blk, 2, r_blk, lane), in_map),
            ],
            out_specs=pl.BlockSpec((n_blk, 1, 4, lane),
                                   lambda i, p, s: (i, p, 0, 0)),
        ),
        compiler_params=pltpu.CompilerParams(
            dimension_semantics=("parallel", "parallel", "arbitrary")),
    )(x, a)


@jax.jit
def mpa(inputs, anwer, value=VALUE):
    """Pallas equivalent of MPA().forward(inputs, anwer); returns a scalar."""
    n, c, h, w = inputs.shape
    assert anwer.shape == (n, 2, h, w), "answer must be (N, 2, H, W)"
    hw = h * w

    a = anwer
    if a.dtype == jnp.bool_:
        a = a.astype(jnp.int8)        # avoid i1 memrefs; still 1 byte/pixel

    t = _choose_tiling(hw, n, c, inputs.dtype.itemsize, a.dtype.itemsize)

    x = inputs.reshape(n, c, hw)      # free reshape of contiguous NCHW
    a = a.reshape(n, 2, hw)
    hw_pad = t["rows"] * t["lane"]
    if t["needs_pad"]:
        # Rare fallback (H*W not a multiple of 128).  Fold the answer -> int8
        # shrink into the unavoidable copy; padded answer pixels are zero, so
        # they contribute nothing to union/total.
        a = jnp.pad((a != 0).astype(jnp.int8),
                    ((0, 0), (0, 0), (0, hw_pad - hw)))
        x = jnp.pad(x, ((0, 0), (0, 0), (0, hw_pad - hw)))
    x = x.reshape(n, c, t["rows"], t["lane"])
    a = a.reshape(n, 2, t["rows"], t["lane"])

    counts = _mpa_counts(x, a, t)                 # (N, n_split, 4, lane) f32
    sums = jnp.sum(counts, axis=(1, 3))           # (N, 4)
    inter, tot = sums[:, 0:2], sums[:, 2:4]
    v = jnp.asarray(value, jnp.float32)
    return jnp.mean((inter + v) / (tot + v))


def mpa_ref(inputs, anwer, value=VALUE):
    """Pure-JAX reference mirroring the PyTorch forward, for validation."""
    pred = jnp.argmax(jax.nn.softmax(inputs, axis=-3), axis=-3, keepdims=True)
    p1 = pred == 0
    p2 = pred != 0
    preds = jnp.concatenate([p1, p2], axis=-3)
    ans = anwer != 0
    union = jnp.sum(preds & ans, axis=(-2, -1))
    total = jnp.sum(ans, axis=(-2, -1))
    return jnp.mean((union + value) / (total + value))


if __name__ == "__main__":
    key = jax.random.PRNGKey(0)

    cases = [
        # small / divisible lane, N-batched block (primary small-shape test)
        (2, 4, 16, 16),
        # pad fallback (hw=400 not a multiple of 128) + int8 answer fold
        (2, 3, 20, 20),
        # multi-step spatial reduction (resident accumulator across s)
        (2, 2, 640, 1024),
        # ragged rows (401 prime > cap): in-kernel tail mask + megacore split
        (1, 2, 401, 1024),
    ]
    ok = True
    for (N, C, H, W) in cases:
        kx, ka, key = jax.random.split(key, 3)
        x = jax.random.normal(kx, (N, C, H, W), dtype=jnp.float32)   # logits
        ans = (jax.random.uniform(ka, (N, 2, H, W)) > 0.5).astype(jnp.float32)

        out = mpa(x, ans)
        jax.block_until_ready(out)
        ref = mpa_ref(x, ans)
        if not jnp.allclose(out, ref, atol=1e-5, rtol=1e-5):
            ok = False
            print("MISMATCH", (N, C, H, W), float(out), float(ref))

    if ok:
        print("KERNEL_OK")
</pallas_src>

<mosaic_0001>
module attributes {stable_mosaic.version = 11 : i64} {
  func.func @_mpa_count_kernel(%arg0: i32, %arg1: i32, %arg2: i32, %arg3: memref<2x4x1x256xf32, #tpu.memory_space<vmem>>, %arg4: memref<2x2x1x256xf32, #tpu.memory_space<vmem>>, %arg5: memref<2x1x4x256xf32, #tpu.memory_space<vmem>>) attributes {dimension_semantics = [#tpu.dimension_semantics<parallel>, #tpu.dimension_semantics<parallel>, #tpu.dimension_semantics<arbitrary>], iteration_bounds = array<i64: 1, 1, 1>, scalar_prefetch = 0 : i64, scratch_operands = 0 : i64, tpu.core_type = #tpu.core_type<tc>, window_params = [{transform_indices = @transform_0, window_bounds = array<i64: 2, 4, 1, 256>}, {transform_indices = @transform_1, window_bounds = array<i64: 2, 2, 1, 256>}, {transform_indices = @transform_2, window_bounds = array<i64: 2, 1, 4, 256>}]} {
    %c0_i32 = arith.constant 0 : i32
    %0 = arith.cmpi eq, %arg2, %c0_i32 : i32
    %1 = arith.extui %0 : i1 to i32
    %c0_i32_0 = arith.constant 0 : i32
    %2 = arith.cmpi ne, %1, %c0_i32_0 : i32
    scf.if %2 {
      %cst_65 = arith.constant 0.000000e+00 : f32
      %79 = vector.broadcast %cst_65 : f32 to vector<2x1x4x256xf32>
      %c0_66 = arith.constant 0 : index
      %c0_67 = arith.constant 0 : index
      %c0_68 = arith.constant 0 : index
      %c0_69 = arith.constant 0 : index
      %80 = vector.load %arg5[%c0_66, %c0_67, %c0_68, %c0_69] : memref<2x1x4x256xf32, #tpu.memory_space<vmem>>, vector<2x1x4x256xf32>
      tpu.vector_store %arg5[%c0_66, %c0_67, %c0_68, %c0_69], %79 {strides = array<i32>} : memref<2x1x4x256xf32, #tpu.memory_space<vmem>>, vector<2x1x4x256xf32>,
    } else {
    }
    %cst = arith.constant 0.000000e+00 : f32
    %3 = vector.broadcast %cst : f32 to vector<1x256xf32>
    %c0 = arith.constant 0 : index
    %c0_1 = arith.constant 0 : index
    %c0_2 = arith.constant 0 : index
    %c0_3 = arith.constant 0 : index
    %4 = vector.load %arg3[%c0, %c0_1, %c0_2, %c0_3] : memref<2x4x1x256xf32, #tpu.memory_space<vmem>>, vector<1x1x1x256xf32>
    %5 = vector.shape_cast %4 : vector<1x1x1x256xf32> to vector<1x256xf32>
    %c0_4 = arith.constant 0 : index
    %c1 = arith.constant 1 : index
    %c0_5 = arith.constant 0 : index
    %c0_6 = arith.constant 0 : index
    %6 = vector.load %arg3[%c0_4, %c1, %c0_5, %c0_6] : memref<2x4x1x256xf32, #tpu.memory_space<vmem>>, vector<1x1x1x256xf32>
    %7 = vector.shape_cast %6 : vector<1x1x1x256xf32> to vector<1x256xf32>
    %c0_7 = arith.constant 0 : index
    %c2 = arith.constant 2 : index
    %c0_8 = arith.constant 0 : index
    %c0_9 = arith.constant 0 : index
    %8 = vector.load %arg3[%c0_7, %c2, %c0_8, %c0_9] : memref<2x4x1x256xf32, #tpu.memory_space<vmem>>, vector<1x1x1x256xf32>
    %9 = vector.shape_cast %8 : vector<1x1x1x256xf32> to vector<1x256xf32>
    %10 = arith.maximumf %7, %9 : vector<1x256xf32>
    %c0_10 = arith.constant 0 : index
    %c3 = arith.constant 3 : index
    %c0_11 = arith.constant 0 : index
    %c0_12 = arith.constant 0 : index
    %11 = vector.load %arg3[%c0_10, %c3, %c0_11, %c0_12] : memref<2x4x1x256xf32, #tpu.memory_space<vmem>>, vector<1x1x1x256xf32>
    %12 = vector.shape_cast %11 : vector<1x1x1x256xf32> to vector<1x256xf32>
    %13 = arith.maximumf %10, %12 : vector<1x256xf32>
    %14 = arith.cmpf oge, %5, %13 : vector<1x256xf32>
    %c0_13 = arith.constant 0 : index
    %c0_14 = arith.constant 0 : index
    %c0_15 = arith.constant 0 : index
    %c0_16 = arith.constant 0 : index
    %15 = vector.load %arg4[%c0_13, %c0_14, %c0_15, %c0_16] : memref<2x2x1x256xf32, #tpu.memory_space<vmem>>, vector<1x1x1x256xf32>
    %16 = vector.shape_cast %15 : vector<1x1x1x256xf32> to vector<1x256xf32>
    %c0_17 = arith.constant 0 : index
    %c1_18 = arith.constant 1 : index
    %c0_19 = arith.constant 0 : index
    %c0_20 = arith.constant 0 : index
    %17 = vector.load %arg4[%c0_17, %c1_18, %c0_19, %c0_20] : memref<2x2x1x256xf32, #tpu.memory_space<vmem>>, vector<1x1x1x256xf32>
    %18 = vector.shape_cast %17 : vector<1x1x1x256xf32> to vector<1x256xf32>
    %cst_21 = arith.constant 0.000000e+00 : f32
    %19 = vector.broadcast %cst_21 : f32 to vector<1x256xf32>
    %20 = arith.cmpf one, %16, %19 : vector<1x256xf32>
    %cst_22 = arith.constant 0.000000e+00 : f32
    %21 = vector.broadcast %cst_22 : f32 to vector<1x256xf32>
    %22 = arith.cmpf one, %18, %21 : vector<1x256xf32>
    %23 = arith.extui %20 : vector<1x256xi1> to vector<1x256xi32>
    %24 = arith.sitofp %23 : vector<1x256xi32> to vector<1x256xf32>
    %25 = arith.extui %22 : vector<1x256xi1> to vector<1x256xi32>
    %26 = arith.sitofp %25 : vector<1x256xi32> to vector<1x256xf32>
    %27 = arith.select %14, %24, %3 : vector<1x256xi1>, vector<1x256xf32>
    %cst_23 = arith.constant dense<0.000000e+00> : vector<256xf32>
    %28 = vector.multi_reduction <add>, %27, %cst_23 [0] : vector<1x256xf32> to vector<256xf32>
    %29 = vector.shape_cast %28 : vector<256xf32> to vector<1x256xf32>
    %30 = arith.select %14, %3, %26 : vector<1x256xi1>, vector<1x256xf32>
    %cst_24 = arith.constant dense<0.000000e+00> : vector<256xf32>
    %31 = vector.multi_reduction <add>, %30, %cst_24 [0] : vector<1x256xf32> to vector<256xf32>
    %32 = vector.shape_cast %31 : vector<256xf32> to vector<1x256xf32>
    %cst_25 = arith.constant dense<0.000000e+00> : vector<256xf32>
    %33 = vector.multi_reduction <add>, %24, %cst_25 [0] : vector<1x256xf32> to vector<256xf32>
    %34 = vector.shape_cast %33 : vector<256xf32> to vector<1x256xf32>
    %cst_26 = arith.constant dense<0.000000e+00> : vector<256xf32>
    %35 = vector.multi_reduction <add>, %26, %cst_26 [0] : vector<1x256xf32> to vector<256xf32>
    %36 = vector.shape_cast %35 : vector<256xf32> to vector<1x256xf32>
    %37 = tpu.concatenate %29, %32, %34, %36 in 0 : vector<1x256xf32>, vector<1x256xf32>, vector<1x256xf32>, vector<1x256xf32> -> vector<4x256xf32>
    %c1_27 = arith.constant 1 : index
    %c0_28 = arith.constant 0 : index
    %c0_29 = arith.constant 0 : index
    %c0_30 = arith.constant 0 : index
    %38 = vector.load %arg3[%c1_27, %c0_28, %c0_29, %c0_30] : memref<2x4x1x256xf32, #tpu.memory_space<vmem>>, vector<1x1x1x256xf32>
    %39 = vector.shape_cast %38 : vector<1x1x1x256xf32> to vector<1x256xf32>
    %c1_31 = arith.constant 1 : index
    %c1_32 = arith.constant 1 : index
    %c0_33 = arith.constant 0 : index
    %c0_34 = arith.constant 0 : index
    %40 = vector.load %arg3[%c1_31, %c1_32, %c0_33, %c0_34] : memref<2x4x1x256xf32, #tpu.memory_space<vmem>>, vector<1x1x1x256xf32>
    %41 = vector.shape_cast %40 : vector<1x1x1x256xf32> to vector<1x256xf32>
    %c1_35 = arith.constant 1 : index
    %c2_36 = arith.constant 2 : index
    %c0_37 = arith.constant 0 : index
    %c0_38 = arith.constant 0 : index
    %42 = vector.load %arg3[%c1_35, %c2_36, %c0_37, %c0_38] : memref<2x4x1x256xf32, #tpu.memory_space<vmem>>, vector<1x1x1x256xf32>
    %43 = vector.shape_cast %42 : vector<1x1x1x256xf32> to vector<1x256xf32>
    %44 = arith.maximumf %41, %43 : vector<1x256xf32>
    %c1_39 = arith.constant 1 : index
    %c3_40 = arith.constant 3 : index
    %c0_41 = arith.constant 0 : index
    %c0_42 = arith.constant 0 : index
    %45 = vector.load %arg3[%c1_39, %c3_40, %c0_41, %c0_42] : memref<2x4x1x256xf32, #tpu.memory_space<vmem>>, vector<1x1x1x256xf32>
    %46 = vector.shape_cast %45 : vector<1x1x1x256xf32> to vector<1x256xf32>
    %47 = arith.maximumf %44, %46 : vector<1x256xf32>
    %48 = arith.cmpf oge, %39, %47 : vector<1x256xf32>
    %c1_43 = arith.constant 1 : index
    %c0_44 = arith.constant 0 : index
    %c0_45 = arith.constant 0 : index
    %c0_46 = arith.constant 0 : index
    %49 = vector.load %arg4[%c1_43, %c0_44, %c0_45, %c0_46] : memref<2x2x1x256xf32, #tpu.memory_space<vmem>>, vector<1x1x1x256xf32>
    %50 = vector.shape_cast %49 : vector<1x1x1x256xf32> to vector<1x256xf32>
    %c1_47 = arith.constant 1 : index
    %c1_48 = arith.constant 1 : index
    %c0_49 = arith.constant 0 : index
    %c0_50 = arith.constant 0 : index
    %51 = vector.load %arg4[%c1_47, %c1_48, %c0_49, %c0_50] : memref<2x2x1x256xf32, #tpu.memory_space<vmem>>, vector<1x1x1x256xf32>
    %52 = vector.shape_cast %51 : vector<1x1x1x256xf32> to vector<1x256xf32>
    %cst_51 = arith.constant 0.000000e+00 : f32
    %53 = vector.broadcast %cst_51 : f32 to vector<1x256xf32>
    %54 = arith.cmpf one, %50, %53 : vector<1x256xf32>
    %cst_52 = arith.constant 0.000000e+00 : f32
    %55 = vector.broadcast %cst_52 : f32 to vector<1x256xf32>
    %56 = arith.cmpf one, %52, %55 : vector<1x256xf32>
    %57 = arith.extui %54 : vector<1x256xi1> to vector<1x256xi32>
    %58 = arith.sitofp %57 : vector<1x256xi32> to vector<1x256xf32>
    %59 = arith.extui %56 : vector<1x256xi1> to vector<1x256xi32>
    %60 = arith.sitofp %59 : vector<1x256xi32> to vector<1x256xf32>
    %61 = arith.select %48, %58, %3 : vector<1x256xi1>, vector<1x256xf32>
    %cst_53 = arith.constant dense<0.000000e+00> : vector<256xf32>
    %62 = vector.multi_reduction <add>, %61, %cst_53 [0] : vector<1x256xf32> to vector<256xf32>
    %63 = vector.shape_cast %62 : vector<256xf32> to vector<1x256xf32>
    %64 = arith.select %48, %3, %60 : vector<1x256xi1>, vector<1x256xf32>
    %cst_54 = arith.constant dense<0.000000e+00> : vector<256xf32>
    %65 = vector.multi_reduction <add>, %64, %cst_54 [0] : vector<1x256xf32> to vector<256xf32>
    %66 = vector.shape_cast %65 : vector<256xf32> to vector<1x256xf32>
    %cst_55 = arith.constant dense<0.000000e+00> : vector<256xf32>
    %67 = vector.multi_reduction <add>, %58, %cst_55 [0] : vector<1x256xf32> to vector<256xf32>
    %68 = vector.shape_cast %67 : vector<256xf32> to vector<1x256xf32>
    %cst_56 = arith.constant dense<0.000000e+00> : vector<256xf32>
    %69 = vector.multi_reduction <add>, %60, %cst_56 [0] : vector<1x256xf32> to vector<256xf32>
    %70 = vector.shape_cast %69 : vector<256xf32> to vector<1x256xf32>
    %71 = tpu.concatenate %63, %66, %68, %70 in 0 : vector<1x256xf32>, vector<1x256xf32>, vector<1x256xf32>, vector<1x256xf32> -> vector<4x256xf32>
    %c0_57 = arith.constant 0 : index
    %c0_58 = arith.constant 0 : index
    %c0_59 = arith.constant 0 : index
    %c0_60 = arith.constant 0 : index
    %72 = vector.load %arg5[%c0_57, %c0_58, %c0_59, %c0_60] : memref<2x1x4x256xf32, #tpu.memory_space<vmem>>, vector<2x1x4x256xf32>
    %73 = vector.shape_cast %37 : vector<4x256xf32> to vector<1x4x256xf32>
    %74 = vector.shape_cast %71 : vector<4x256xf32> to vector<1x4x256xf32>
    %75 = tpu.concatenate %73, %74 in 0 : vector<1x4x256xf32>, vector<1x4x256xf32> -> vector<2x4x256xf32>
    %76 = vector.shape_cast %75 : vector<2x4x256xf32> to vector<2x1x4x256xf32>
    %77 = arith.addf %72, %76 : vector<2x1x4x256xf32>
    %c0_61 = arith.constant 0 : index
    %c0_62 = arith.constant 0 : index
    %c0_63 = arith.constant 0 : index
    %c0_64 = arith.constant 0 : index
    %78 = vector.load %arg5[%c0_61, %c0_62, %c0_63, %c0_64] : memref<2x1x4x256xf32, #tpu.memory_space<vmem>>, vector<2x1x4x256xf32>
    tpu.vector_store %arg5[%c0_61, %c0_62, %c0_63, %c0_64], %77 {strides = array<i32>} : memref<2x1x4x256xf32, #tpu.memory_space<vmem>>, vector<2x1x4x256xf32>,
    return
  }
  func.func @transform_0(%arg0: i32, %arg1: i32, %arg2: i32) -> (i32, i32, i32, i32) {
    %c1_i32 = arith.constant 1 : i32
    %0 = arith.muli %arg1, %c1_i32 : i32
    %1 = arith.addi %0, %arg2 : i32
    %c0_i32 = arith.constant 0 : i32
    %c0_i32_0 = arith.constant 0 : i32
    %c0_i32_1 = arith.constant 0 : i32
    return %arg0, %c0_i32, %1, %c0_i32_0 : i32, i32, i32, i32
  }
  func.func @transform_1(%arg0: i32, %arg1: i32, %arg2: i32) -> (i32, i32, i32, i32) {
    %c1_i32 = arith.constant 1 : i32
    %0 = arith.muli %arg1, %c1_i32 : i32
    %1 = arith.addi %0, %arg2 : i32
    %c0_i32 = arith.constant 0 : i32
    %c0_i32_0 = arith.constant 0 : i32
    %c0_i32_1 = arith.constant 0 : i32
    return %arg0, %c0_i32, %1, %c0_i32_0 : i32, i32, i32, i32
  }
  func.func @transform_2(%arg0: i32, %arg1: i32, %arg2: i32) -> (i32, i32, i32, i32) {
    %c0_i32 = arith.constant 0 : i32
    %c0_i32_0 = arith.constant 0 : i32
    %c0_i32_1 = arith.constant 0 : i32
    return %arg0, %arg1, %c0_i32, %c0_i32_0 : i32, i32, i32, i32
  }
}

</mosaic_0001>

<llo_original>
// kernel: mpa.1
$region0: #{mpa.1}
  #allocation0 [shape = 'u32[]', space=smem, size = 0x4, offset = 0x4, fixed_abs, tag = 'smem constant byte address 0x4 - core index']
  #allocation1 [shape = 'u32[72,128]{1,0:T(1,128)}', space=vmem, size = 0x9000, scoped, tag = 'internal scratch']
  %s0 = inlined_call_operand.vmem [shape: f32[2,4,1,256], index: 0, kind: input, shape index: {}]
  %s1 = inlined_call_operand.vmem [shape: f32[2,2,1,256], index: 1, kind: input, shape index: {}]
  %s2 = inlined_call_operand.vmem [shape: f32[2,1,4,256], index: 2, kind: output, shape index: {}]
  %s3 = sld [smem:[#allocation0]]
  $region22: #{mpa.1} parent=0
    _
  %s5 = ssub.s32 1, %s3
  %s6 = scalar_select 0, %s5, %s3
  // Predicated region
  $region2: #{mpa.1} parent=0 // pred_check
    _
  $region3: #{mpa.1} parent=0 // pred_check_branch
    %8 = sbr.rel (0) target = $region5
  $region4: #{mpa.1} parent=0 // pred_region
    %s9 = sadd.s32 0, 0
    %p10 = scmp.lt.s32.totalorder %s9, 0
    %s11 = scalar_select %p10, %s9, 0
    %s12 = smul.addr %s11, 2
    %s13 = scalar_lea.vmem %s0, %s12
    %s14 = sadd.s32 0, 0
  $region5: #{mpa.1} parent=0 // pred_fallthru
    _
  // Predicated region
  $region6: #{mpa.1} parent=0 // pred_check
    _
  $region7: #{mpa.1} parent=0 // pred_check_branch
    %16 = sbr.rel (0) target = $region9
  $region8: #{mpa.1} parent=0 // pred_region
    %s17 = sadd.s32 0, 0
    %p18 = scmp.lt.s32.totalorder %s17, 0
    %s19 = scalar_select %p18, %s17, 0
    %s20 = smul.addr %s19, 2
    %s21 = scalar_lea.vmem %s1, %s20
    %s22 = sadd.s32 0, 0
  $region9: #{mpa.1} parent=0 // pred_fallthru
    _
  %s23 = sadd.s32 0, 0
  %p24 = scmp.lt.s32.totalorder %s23, 0
  %s25 = scalar_select %p24, %s23, 0
  %s26 = smul.addr %s25, 2
  %s27 = scalar_lea.vmem %s0, %s26
  %s28 = sadd.s32 0, 0
  %p29 = scmp.lt.s32.totalorder %s28, 0
  %s30 = scalar_select %p29, %s28, 0
  %s31 = smul.addr %s30, 2
  %s32 = scalar_lea.vmem %s1, %s31
  %s33 = sadd.s32 0, 0
  %p34 = scmp.lt.s32.totalorder %s33, 0
  %s35 = scalar_select %p34, %s33, 0
  %s36 = smul.addr %s35, 2
  %s37 = scalar_lea.vmem %s0, %s36
  %s38 = sadd.s32 0, 0
  %s39 = sadd.s32 0, 0
  %p40 = scmp.lt.s32.totalorder %s39, 0
  %s41 = scalar_select %p40, %s39, 0
  %s42 = smul.addr %s41, 2
  %s43 = scalar_lea.vmem %s1, %s42
  %s44 = sadd.s32 0, 0
  %p45 = scmp.eq.s32.totalorder 0, 0
  // Predicated region
  $region10: #{mpa.1} parent=0 // pred_check
    %p46 = pneg %p45
  $region11: #{mpa.1} parent=0 // pred_check_branch
    %48 = sbr.rel (%p46) target = $region13
  $region12: #{mpa.1} parent=0 // pred_region
    %49 = vst [vmem:[%s2] sm:$0xff] 0.0
    %50 = vst [vmem:[%s2 + $0x8] sm:$0xff] 0.0
  $region13: #{mpa.1} parent=0 // pred_fallthru
    _
  %v51 = vld [vmem:[%s37] sm:$0x3]
  %s52 = scalar_lea.vmem %s37, 2
  %v53 = vld [vmem:[%s52] sm:$0x3]
  %s54 = scalar_lea.vmem %s37, 4
  %v55 = vld [vmem:[%s54] sm:$0x3]
  %v56 = vmax.f32 %v53, %v55
  %s57 = scalar_lea.vmem %s37, 6
  %v58 = vld [vmem:[%s57] sm:$0x3]
  %v59 = vmax.f32 %v56, %v58
  %vm60 = vcmp.ge.f32.partialorder %v51, %v59
  %v61 = vld [vmem:[%s43] sm:$0x3]
  %s62 = scalar_lea.vmem %s43, 2
  %v63 = vld [vmem:[%s62] sm:$0x3]
  %vm64 = vcmp.ne.f32.partialorder %v61, 0.0
  %vm65 = vcmp.ne.f32.partialorder %v63, 0.0
  %v66 = vsel %vm64, 1, 0
  %v67 = vcvt.s32.f32 %v66
  %v68 = vsel %vm65, 1, 0
  %v69 = vcvt.s32.f32 %v68
  %v70 = vsel %vm60, %v67, 0.0
  %v71 = vadd.f32 %v70, 0.0
  %v72 = vsel %vm60, 0.0, %v69
  %v73 = vadd.f32 %v72, 0.0
  %v74 = vadd.f32 %v67, 0.0
  %v75 = vadd.f32 %v69, 0.0
  %v77 = vperm.slane %v71, 0
  %v78 = vperm.slane %v71, 1
  %v82 = vperm.slane %v73, 0
  %v83 = vperm.slane %v73, 1
  %v87 = vperm.slane %v74, 0
  %v88 = vperm.slane %v74, 1
  %v92 = vperm.slane %v75, 0
  %v93 = vperm.slane %v75, 1
  %vm96 = vcmask 1040384
  %v97 = vsel %vm96, %v77, %v82
  %v98 = vsel %vm96, %v78, %v83
  %vm99 = vcmask 1041408
  %v100 = vsel %vm99, %v97, %v87
  %v101 = vsel %vm99, %v98, %v88
  %vm102 = vcmask 1042432
  %v103 = vsel %vm102, %v100, %v92
  %v104 = vsel %vm102, %v101, %v93
  %s105 = scalar_lea.vmem %s37, 8
  %v106 = vld [vmem:[%s105] sm:$0x3]
  %s107 = scalar_lea.vmem %s37, 10
  %v108 = vld [vmem:[%s107] sm:$0x3]
  %s109 = scalar_lea.vmem %s37, 12
  %v110 = vld [vmem:[%s109] sm:$0x3]
  %v111 = vmax.f32 %v108, %v110
  %s112 = scalar_lea.vmem %s37, 14
  %v113 = vld [vmem:[%s112] sm:$0x3]
  %v114 = vmax.f32 %v111, %v113
  %vm115 = vcmp.ge.f32.partialorder %v106, %v114
  %s116 = scalar_lea.vmem %s43, 4
  %v117 = vld [vmem:[%s116] sm:$0x3]
  %s118 = scalar_lea.vmem %s43, 6
  %v119 = vld [vmem:[%s118] sm:$0x3]
  %vm120 = vcmp.ne.f32.partialorder %v117, 0.0
  %vm121 = vcmp.ne.f32.partialorder %v119, 0.0
  %v122 = vsel %vm120, 1, 0
  %v123 = vcvt.s32.f32 %v122
  %v124 = vsel %vm121, 1, 0
  %v125 = vcvt.s32.f32 %v124
  %v126 = vsel %vm115, %v123, 0.0
  %v127 = vadd.f32 %v126, 0.0
  %v128 = vsel %vm115, 0.0, %v125
  %v129 = vadd.f32 %v128, 0.0
  %v130 = vadd.f32 %v123, 0.0
  %v131 = vadd.f32 %v125, 0.0
  %v133 = vperm.slane %v127, 0
  %v134 = vperm.slane %v127, 1
  %v138 = vperm.slane %v129, 0
  %v139 = vperm.slane %v129, 1
  %v143 = vperm.slane %v130, 0
  %v144 = vperm.slane %v130, 1
  %v148 = vperm.slane %v131, 0
  %v149 = vperm.slane %v131, 1
  %v152 = vsel %vm96, %v133, %v138
  %v153 = vsel %vm96, %v134, %v139
  %v154 = vsel %vm99, %v152, %v143
  %v155 = vsel %vm99, %v153, %v144
  %v156 = vsel %vm102, %v154, %v148
  %v157 = vsel %vm102, %v155, %v149
  %v158 = vld [vmem:[%s2] sm:$0xff]
  %v159 = vld [vmem:[%s2 + $0x8] sm:$0xff]
  %v164 = vrot.slane %v104, 4
  %v165 = vrot.slane %v157, 4
  %vm166 = vcmask 1043456
  %v167 = vsel %vm166, %v103, %v164
  %v168 = vsel %vm166, %v156, %v165
  %v171 = vadd.f32 %v158, %v167
  %v172 = vadd.f32 %v159, %v168
  %173 = vst [vmem:[%s2] sm:$0xff] %v171
  %174 = vst [vmem:[%s2 + $0x8] sm:$0xff] %v172
  // Predicated region
  $region14: #{mpa.1} parent=0 // pred_check
    _
  $region15: #{mpa.1} parent=0 // pred_check_branch
    %176 = sbr.rel (0) target = $region17
  $region16: #{mpa.1} parent=0 // pred_region
    _
  $region17: #{mpa.1} parent=0 // pred_fallthru
    _
  // Predicated region
  $region18: #{mpa.1} parent=0 // pred_check
    _
  $region19: #{mpa.1} parent=0 // pred_check_branch
    %178 = sbr.rel (0) target = $region21
  $region20: #{mpa.1} parent=0 // pred_region
    _
  $region21: #{mpa.1} parent=0 // pred_fallthru
    _

</llo_original>
